<compile_context>
chip_gen: v5e
topology: v5e:2x2
jax: 0.10.0
libtpu: 0.0.40
codegen_flags: <defaults>
</compile_context>

<pallas_src>
import jax
import jax.numpy as jnp
from jax import lax
from jax.experimental import pallas as pl
from jax.experimental.pallas import tpu as pltpu

EPS = 1e-5


def make_temporal_block_kernel(C_in, C_out, L_item, LB, K, dilation, mm_dtype):
    d = int(dilation)
    shifts = [(K - 1 - k) * d for k in range(K)]   # causal right-shift per tap k

    def kernel(x_ref, scale_ref, shift_ref, wf_ref, w2_ref, o_ref):
        # ---- BatchNorm1d (eval, running stats) folded to one FMA (f32) ----
        y = x_ref[...] * scale_ref[...] + shift_ref[...]            # (C_in, LB)

        # Per-item local time index (batch flattened into lanes, item = L_item lanes).
        lane = lax.broadcasted_iota(jnp.int32, (1, LB), 1)
        tloc = lane if LB == L_item else lane % L_item
        masks = {s: (tloc >= s) for s in set(shifts) if s > 0}      # hoisted once
        ones_row = jnp.ones((1, LB), mm_dtype)                      # folded-bias row

        def tap(v, s):
            # v delayed by s time steps, causally zero-filled per batch item.
            if s == 0:
                return v
            return jnp.where(masks[s], pltpu.roll(v, shift=s, axis=1),
                             jnp.zeros((), v.dtype))

        # ---- conv1 (+ fused 1x1 residual conv + biases) as ONE im2col matmul ----
        yq = y.astype(mm_dtype)                     # cast BEFORE building the RHS
        rhs1 = jnp.concatenate([tap(yq, s) for s in shifts] + [ones_row], axis=0)
        fused = jnp.dot(wf_ref[...], rhs1, preferred_element_type=jnp.float32)
        out1 = jnp.maximum(fused[:C_out], 0.0)      # relu (dropout = identity in eval)
        res = fused[C_out:]                         # downsample(y): wd @ y + bd

        # ---- conv2 (+ bias) as ONE im2col matmul ----
        o1q = out1.astype(mm_dtype)
        rhs2 = jnp.concatenate([tap(o1q, s) for s in shifts] + [ones_row], axis=0)
        out2 = jnp.maximum(
            jnp.dot(w2_ref[...], rhs2, preferred_element_type=jnp.float32), 0.0)

        o_ref[...] = jnp.maximum(out2 + res, 0.0)

    return kernel


def _bytes_per_lane(C_in, C_out, K, mm_itemsize):
    """Rough VMEM bytes live per output lane inside one grid step."""
    b = 4 * (2 * (C_in + C_out)        # double-buffered x / out pipeline blocks
             + 2 * C_out               # fused matmul f32 output (pre-act + residual)
             + 3 * C_out)              # out1 / out2 / final-sum temporaries
    b += mm_itemsize * (K * C_in + K * C_out + 2)   # im2col RHS buffers (+ ones rows)
    return b


def _device_info():
    """(two_tensorcores, vmem_tile_budget_bytes, vmem_cap_bytes) for the local
    TPU generation; conservative fallback if the query fails."""
    try:
        kind = jax.devices()[0].device_kind.lower()
    except Exception:
        kind = ""
    is_v7 = "v7" in kind
    # v7x has 2 TCs/chip; v4 / v5p are megacore (2 TCs behind one device).
    two_tc = is_v7 or ("v4" in kind) or ("v5p" in kind) or kind.strip().endswith(" v5")
    if is_v7:                                   # only 64 MiB physical VMEM
        return two_tc, 24 << 20, 56 << 20
    if ("v2" in kind) or ("v3" in kind):        # small VMEM on older parts
        return two_tc, 10 << 20, 14 << 20
    return two_tc, 48 << 20, 100 << 20          # v5e / v6e / v4 / v5p: 128 MiB VMEM


def _pick_batch_tile(N, L, C_in, C_out, K, two_tc, vmem_budget, mm_itemsize):
    """Pick (NB, L_item): batch elements per grid step and per-item lane length.

    Lane-dense tiles sized from the VMEM budget (capped at 32k lanes).  On 2-TC
    parts prefer an even number (>=2) of 'parallel' grid steps so both cores
    get balanced work; on single-TC parts take the largest tile (grid=(1,) if
    it fits).  Falls back to 128-lane padding of the time axis when N*L cannot
    be tiled into 128-aligned blocks.
    """
    bpl = _bytes_per_lane(C_in, C_out, K, mm_itemsize)
    lb_max = max(128, min(32 * 1024, (vmem_budget // bpl) // 128 * 128))

    def pick(l_item):
        cands = [nb for nb in range(1, N + 1)
                 if N % nb == 0 and (nb * l_item) % 128 == 0 and nb * l_item <= lb_max]
        if not cands:
            return None
        if two_tc and N >= 2:
            even = [nb for nb in cands if (N // nb) >= 2 and (N // nb) % 2 == 0]
            if even:
                return max(even)
            multi = [nb for nb in cands if (N // nb) >= 2]
            if multi:
                return max(multi)
        return max(cands)

    nb = pick(L)
    if nb is not None:
        return nb, L
    # No 128-aligned tiling exists (e.g. odd L): pad each item to a multiple of 128.
    l_pad = ((L + 127) // 128) * 128
    nb = pick(l_pad)
    return (nb if nb is not None else 1), l_pad


def temporal_block_forward(x, params, *, kernel_size, stride, dilation, padding,
                           matmul_dtype=jnp.float32):
    assert stride == 1, "TODO(synk): stride > 1 not implemented"
    assert padding == (kernel_size - 1) * dilation, \
        "residual add requires causal padding = (K-1)*dilation"
    N, C_in, L = x.shape
    K = int(kernel_size)

    w1 = params["w1"]                        # (K, C_out, C_in), weight-norm applied
    C_out = w1.shape[1]
    w2 = params["w2"]                        # (K, C_out, C_out)
    wd = params.get("wd")
    bd = params.get("bd")
    if wd is None:                           # n_inputs == n_outputs -> identity residual
        wd = jnp.eye(C_in, dtype=jnp.float32)
        bd = jnp.zeros((C_in, 1), jnp.float32)

    # ---- fold eval-mode BatchNorm into per-channel scale / shift ----
    scale = params["gamma"] / jnp.sqrt(params["rvar"] + EPS)        # (C_in, 1)
    shift = params["beta"] - params["rmean"] * scale                # (C_in, 1)

    # ---- im2col weight layout; fuse 1x1 residual conv and fold biases ----
    w1_flat = jnp.transpose(w1, (1, 0, 2)).reshape(C_out, K * C_in)
    w2_flat = jnp.transpose(w2, (1, 0, 2)).reshape(C_out, K * C_out)
    wd_pad = jnp.zeros((C_out, K * C_in), jnp.float32)
    wd_pad = wd_pad.at[:, (K - 1) * C_in:].set(wd)     # un-shifted (k = K-1) tap block
    w_fused = jnp.concatenate([w1_flat, wd_pad], axis=0)            # (2*C_out, K*C_in)
    b_fused = jnp.concatenate([params["b1"], bd], axis=0)           # (2*C_out, 1)
    w_fused = jnp.concatenate([w_fused, b_fused], axis=1)           # bias -> last column
    w2_full = jnp.concatenate([w2_flat, params["b2"]], axis=1)      # (C_out, K*C_out+1)

    w_fused = w_fused.astype(matmul_dtype)
    w2_full = w2_full.astype(matmul_dtype)
    mm_itemsize = jnp.dtype(matmul_dtype).itemsize

    # ---- generation-aware lane tiling ----
    two_tc, vmem_budget, vmem_cap = _device_info()
    NB, L_item = _pick_batch_tile(N, L, C_in, C_out, K, two_tc, vmem_budget,
                                  mm_itemsize)
    LB = NB * L_item
    assert LB % 128 == 0 and N % NB == 0

    # ---- flatten the batch into the lane axis: (N, C, L) -> (C, N*L_item) ----
    if L_item != L:          # lane-pad each item so the per-item length is 128-aligned
        x = jnp.pad(x, ((0, 0), (0, 0), (0, L_item - L)))
    x_flat = jnp.transpose(x, (1, 0, 2)).reshape(C_in, N * L_item)

    grid = (N // NB,)
    kernel = make_temporal_block_kernel(C_in, C_out, L_item, LB, K, dilation,
                                        matmul_dtype)

    def rep(shape):                          # replicated (non-tiled) operand
        return pl.BlockSpec(shape, lambda i: (0,) * len(shape))

    grid_spec = pltpu.PrefetchScalarGridSpec(
        num_scalar_prefetch=0,
        grid=grid,
        in_specs=[
            pl.BlockSpec((C_in, LB), lambda i: (0, i)),   # x (batch flattened in lanes)
            rep((C_in, 1)),                               # BN scale
            rep((C_in, 1)),                               # BN shift
            rep((2 * C_out, K * C_in + 1)),               # conv1 + residual + biases
            rep((C_out, K * C_out + 1)),                  # conv2 weight + bias
        ],
        out_specs=pl.BlockSpec((C_out, LB), lambda i: (0, i)),
    )

    # Raise the scoped-VMEM limit only when the tile actually needs it.
    est_vmem = (_bytes_per_lane(C_in, C_out, K, mm_itemsize) * LB
                + 2 * mm_itemsize * (int(w_fused.size) + int(w2_full.size))
                + (8 << 10))
    vmem_limit = int(min(vmem_cap, (est_vmem * 3) // 2)) if est_vmem > (16 << 20) else None

    flops = 2 * N * L_item * (2 * C_out * (K * C_in + 1) + C_out * (K * C_out + 1))
    bytes_accessed = (4 * (C_in + C_out) * N * L_item
                      + mm_itemsize * (int(w_fused.size) + int(w2_full.size))
                      + 8 * C_in)
    cost = pl.CostEstimate(flops=int(flops), transcendentals=0,
                           bytes_accessed=int(bytes_accessed))

    out_flat = pl.pallas_call(
        kernel,
        out_shape=jax.ShapeDtypeStruct((C_out, N * L_item), jnp.float32),
        grid_spec=grid_spec,
        compiler_params=pltpu.CompilerParams(
            dimension_semantics=("parallel",),
            vmem_limit_bytes=vmem_limit),
        cost_estimate=cost,
    )(x_flat, scale, shift, w_fused, w2_full)

    out = jnp.transpose(out_flat.reshape(C_out, N, L_item), (1, 0, 2))
    return out[:, :, :L] if L_item != L else out


def apply_weight_norm(v, g):
    # PyTorch weight_norm with dim=0: W = g * V / ||V||  (norm over all dims but 0)
    norm = jnp.sqrt(jnp.sum(v * v, axis=tuple(range(1, v.ndim)), keepdims=True))
    return v * (g.reshape((-1,) + (1,) * (v.ndim - 1)) / norm)


def reference_forward(x, p, *, kernel_size, dilation, padding):
    # pure-JAX reference using lax.conv_general_dilated
    N, C_in, L = x.shape
    C_out = p["w1"].shape[1]
    gamma, beta = p["gamma"][None], p["beta"][None]
    rmean, rvar = p["rmean"][None], p["rvar"][None]
    y = (x - rmean) / jnp.sqrt(rvar + EPS) * gamma + beta

    w1 = jnp.transpose(p["w1"], (1, 2, 0))     # (C_out, C_in, K)
    w2 = jnp.transpose(p["w2"], (1, 2, 0))     # (C_out, C_out, K)
    dn1 = lax.conv_dimension_numbers(y.shape, w1.shape, ("NCH", "OIH", "NCH"))
    out1 = lax.conv_general_dilated(y, w1, window_strides=(1,),
                                    padding=[(padding, 0)], rhs_dilation=(dilation,),
                                    dimension_numbers=dn1)
    out1 = jnp.maximum(out1 + p["b1"].reshape(1, C_out, 1), 0.0)
    dn2 = lax.conv_dimension_numbers(out1.shape, w2.shape, ("NCH", "OIH", "NCH"))
    out2 = lax.conv_general_dilated(out1, w2, window_strides=(1,),
                                    padding=[(padding, 0)], rhs_dilation=(dilation,),
                                    dimension_numbers=dn2)
    out2 = jnp.maximum(out2 + p["b2"].reshape(1, C_out, 1), 0.0)
    res = jnp.einsum("oi,nil->nol", p["wd"], y) + p["bd"].reshape(1, C_out, 1)
    return jnp.maximum(out2 + res, 0.0)


if __name__ == "__main__":
    # Module config (small, TCN-style)
    N, C_in, C_out, L = 2, 8, 16, 128
    K, stride, dilation = 3, 1, 1
    padding = (K - 1) * dilation

    key = jax.random.PRNGKey(0)
    ks = jax.random.split(key, 14)

    x = jax.random.normal(ks[0], (N, C_in, L), jnp.float32)

    # BatchNorm1d params / running stats (deterministic)
    gamma = 1.0 + 0.1 * jax.random.normal(ks[1], (C_in, 1), jnp.float32)
    beta = 0.1 * jax.random.normal(ks[2], (C_in, 1), jnp.float32)
    rmean = 0.1 * jax.random.normal(ks[3], (C_in, 1), jnp.float32)
    rvar = jax.random.uniform(ks[4], (C_in, 1), jnp.float32, 0.5, 1.5)

    # weight_norm'd convs: W = g * V / ||V||   (V ~ N(0, 0.01), as in init_weights)
    v1 = 0.01 * jax.random.normal(ks[5], (C_out, C_in, K), jnp.float32)
    g1 = jax.random.uniform(ks[6], (C_out,), jnp.float32, 0.5, 1.5)
    b1 = 0.1 * jax.random.normal(ks[7], (C_out, 1), jnp.float32)
    v2 = 0.01 * jax.random.normal(ks[8], (C_out, C_out, K), jnp.float32)
    g2 = jax.random.uniform(ks[9], (C_out,), jnp.float32, 0.5, 1.5)
    b2 = 0.1 * jax.random.normal(ks[10], (C_out, 1), jnp.float32)

    # downsample 1x1 Conv1d (n_inputs != n_outputs)
    wd = 0.01 * jax.random.normal(ks[11], (C_out, C_in), jnp.float32)
    bd = 0.1 * jax.random.normal(ks[12], (C_out, 1), jnp.float32)

    w1_eff = jnp.transpose(apply_weight_norm(v1, g1), (2, 0, 1))  # (K, C_out, C_in)
    w2_eff = jnp.transpose(apply_weight_norm(v2, g2), (2, 0, 1))  # (K, C_out, C_out)

    params = dict(gamma=gamma, beta=beta, rmean=rmean, rvar=rvar,
                  w1=w1_eff, b1=b1, w2=w2_eff, b2=b2, wd=wd, bd=bd)

    out = temporal_block_forward(x, params, kernel_size=K, stride=stride,
                                 dilation=dilation, padding=padding,
                                 matmul_dtype=jnp.float32)  # bf16 OK on v5e/v6e/v7x
    out = jax.block_until_ready(out)

    ref = reference_forward(x, params, kernel_size=K, dilation=dilation,
                            padding=padding)
    if not jnp.allclose(out, ref, atol=1e-3, rtol=1e-3):
        raise AssertionError("Pallas TemporalBlock output mismatch vs JAX reference")

    print("KERNEL_OK")
</pallas_src>

<mosaic_0001>
module attributes {stable_mosaic.version = 11 : i64} {
  func.func @kernel(%arg0: i32, %arg1: memref<8x256xf32, #tpu.memory_space<vmem>>, %arg2: memref<8x1xf32, #tpu.memory_space<vmem>>, %arg3: memref<8x1xf32, #tpu.memory_space<vmem>>, %arg4: memref<32x25xf32, #tpu.memory_space<vmem>>, %arg5: memref<16x49xf32, #tpu.memory_space<vmem>>, %arg6: memref<16x256xf32, #tpu.memory_space<vmem>>) attributes {dimension_semantics = [#tpu.dimension_semantics<parallel>], iteration_bounds = array<i64: 1>, scalar_prefetch = 0 : i64, scratch_operands = 0 : i64, tpu.core_type = #tpu.core_type<tc>, window_params = [{transform_indices = @transform_0, window_bounds = array<i64: 8, 256>}, {pipeline_mode = #tpu.pipeline_mode<synchronous>, transform_indices = @transform_1, window_bounds = array<i64: 8, 1>}, {pipeline_mode = #tpu.pipeline_mode<synchronous>, transform_indices = @transform_2, window_bounds = array<i64: 8, 1>}, {pipeline_mode = #tpu.pipeline_mode<synchronous>, transform_indices = @transform_3, window_bounds = array<i64: 32, 25>}, {pipeline_mode = #tpu.pipeline_mode<synchronous>, transform_indices = @transform_4, window_bounds = array<i64: 16, 49>}, {transform_indices = @transform_5, window_bounds = array<i64: 16, 256>}]} {
    %c0 = arith.constant 0 : index
    %c0_0 = arith.constant 0 : index
    %0 = vector.load %arg1[%c0, %c0_0] : memref<8x256xf32, #tpu.memory_space<vmem>>, vector<8x256xf32>
    %c0_1 = arith.constant 0 : index
    %c0_2 = arith.constant 0 : index
    %1 = vector.load %arg2[%c0_1, %c0_2] : memref<8x1xf32, #tpu.memory_space<vmem>>, vector<8x1xf32>
    %2 = vector.broadcast %1 : vector<8x1xf32> to vector<8x256xf32>
    %3 = arith.mulf %0, %2 : vector<8x256xf32>
    %c0_3 = arith.constant 0 : index
    %c0_4 = arith.constant 0 : index
    %4 = vector.load %arg3[%c0_3, %c0_4] : memref<8x1xf32, #tpu.memory_space<vmem>>, vector<8x1xf32>
    %5 = vector.broadcast %4 : vector<8x1xf32> to vector<8x256xf32>
    %6 = arith.addf %3, %5 : vector<8x256xf32>
    %7 = tpu.iota {dimensions = array<i32: 1>} : vector<1x256xi32>
    %c128_i32 = arith.constant 128 : i32
    %c0_i32 = arith.constant 0 : i32
    %8 = arith.cmpi eq, %c128_i32, %c0_i32 : i32
    %c1_i32 = arith.constant 1 : i32
    %9 = arith.select %8, %c1_i32, %c128_i32 : i32
    %10 = vector.broadcast %9 : i32 to vector<1x256xi32>
    %11 = arith.remsi %7, %10 : vector<1x256xi32>
    %c0_i32_5 = arith.constant 0 : i32
    %12 = vector.broadcast %c0_i32_5 : i32 to vector<1x256xi32>
    %13 = arith.cmpi ne, %11, %12 : vector<1x256xi32>
    %c0_i32_6 = arith.constant 0 : i32
    %14 = vector.broadcast %c0_i32_6 : i32 to vector<1x256xi32>
    %15 = arith.cmpi slt, %11, %14 : vector<1x256xi32>
    %c0_i32_7 = arith.constant 0 : i32
    %16 = arith.cmpi slt, %9, %c0_i32_7 : i32
    %17 = vector.broadcast %16 : i1 to vector<1x256xi1>
    %18 = vector.broadcast %17 : vector<1x256xi1> to vector<1x256xi1>
    %19 = arith.xori %15, %18 : vector<1x256xi1>
    %20 = arith.andi %19, %13 : vector<1x256xi1>
    %21 = vector.broadcast %9 : i32 to vector<1x256xi32>
    %22 = arith.addi %11, %21 : vector<1x256xi32>
    %23 = arith.select %20, %22, %11 : vector<1x256xi1>, vector<1x256xi32>
    %c1_i32_8 = arith.constant 1 : i32
    %24 = vector.broadcast %c1_i32_8 : i32 to vector<1x256xi32>
    %25 = arith.cmpi sge, %23, %24 : vector<1x256xi32>
    %c2_i32 = arith.constant 2 : i32
    %26 = vector.broadcast %c2_i32 : i32 to vector<1x256xi32>
    %27 = arith.cmpi sge, %23, %26 : vector<1x256xi32>
    %cst = arith.constant 1.000000e+00 : f32
    %28 = vector.broadcast %cst : f32 to vector<1x256xf32>
    %c2_i32_9 = arith.constant 2 : i32
    %29 = tpu.dynamic_rotate %6 by %c2_i32_9 dim 1 : vector<8x256xf32>, i32 -> vector<8x256xf32>
    %cst_10 = arith.constant 0.000000e+00 : f32
    %30 = vector.shape_cast %27 : vector<1x256xi1> to vector<1x256xi1>
    %31 = vector.broadcast %30 : vector<1x256xi1> to vector<8x256xi1>
    %32 = vector.broadcast %cst_10 : f32 to vector<8x256xf32>
    %33 = arith.select %31, %29, %32 : vector<8x256xi1>, vector<8x256xf32>
    %c1_i32_11 = arith.constant 1 : i32
    %34 = tpu.dynamic_rotate %6 by %c1_i32_11 dim 1 : vector<8x256xf32>, i32 -> vector<8x256xf32>
    %cst_12 = arith.constant 0.000000e+00 : f32
    %35 = vector.shape_cast %25 : vector<1x256xi1> to vector<1x256xi1>
    %36 = vector.broadcast %35 : vector<1x256xi1> to vector<8x256xi1>
    %37 = vector.broadcast %cst_12 : f32 to vector<8x256xf32>
    %38 = arith.select %36, %34, %37 : vector<8x256xi1>, vector<8x256xf32>
    %39 = tpu.concatenate %33, %38, %6, %28 in 0 : vector<8x256xf32>, vector<8x256xf32>, vector<8x256xf32>, vector<1x256xf32> -> vector<25x256xf32>
    %c0_13 = arith.constant 0 : index
    %c0_14 = arith.constant 0 : index
    %40 = vector.load %arg4[%c0_13, %c0_14] : memref<32x25xf32, #tpu.memory_space<vmem>>, vector<32x25xf32>
    %cst_15 = arith.constant dense<0.000000e+00> : vector<32x256xf32>
    %41 = tpu.matmul %40, %39, %cst_15 {dimension_numbers = #tpu.dot_dimension_numbers<[1], [0], [0], [1], [0, 0, 1, 1], [], []>} : vector<32x25xf32>, vector<25x256xf32>, vector<32x256xf32> -> vector<32x256xf32>
    %42 = vector.extract_strided_slice %41 {offsets = [0, 0], sizes = [16, 256], strides = [1, 1]} : vector<32x256xf32> to vector<16x256xf32>
    %cst_16 = arith.constant 0.000000e+00 : f32
    %43 = vector.broadcast %cst_16 : f32 to vector<16x256xf32>
    %44 = arith.maximumf %42, %43 : vector<16x256xf32>
    %45 = vector.extract_strided_slice %41 {offsets = [16, 0], sizes = [16, 256], strides = [1, 1]} : vector<32x256xf32> to vector<16x256xf32>
    %c2_i32_17 = arith.constant 2 : i32
    %46 = tpu.dynamic_rotate %44 by %c2_i32_17 dim 1 : vector<16x256xf32>, i32 -> vector<16x256xf32>
    %cst_18 = arith.constant 0.000000e+00 : f32
    %47 = vector.shape_cast %27 : vector<1x256xi1> to vector<1x256xi1>
    %48 = vector.broadcast %47 : vector<1x256xi1> to vector<16x256xi1>
    %49 = vector.broadcast %cst_18 : f32 to vector<16x256xf32>
    %50 = arith.select %48, %46, %49 : vector<16x256xi1>, vector<16x256xf32>
    %c1_i32_19 = arith.constant 1 : i32
    %51 = tpu.dynamic_rotate %44 by %c1_i32_19 dim 1 : vector<16x256xf32>, i32 -> vector<16x256xf32>
    %cst_20 = arith.constant 0.000000e+00 : f32
    %52 = vector.shape_cast %25 : vector<1x256xi1> to vector<1x256xi1>
    %53 = vector.broadcast %52 : vector<1x256xi1> to vector<16x256xi1>
    %54 = vector.broadcast %cst_20 : f32 to vector<16x256xf32>
    %55 = arith.select %53, %51, %54 : vector<16x256xi1>, vector<16x256xf32>
    %56 = tpu.concatenate %50, %55, %44, %28 in 0 : vector<16x256xf32>, vector<16x256xf32>, vector<16x256xf32>, vector<1x256xf32> -> vector<49x256xf32>
    %c0_21 = arith.constant 0 : index
    %c0_22 = arith.constant 0 : index
    %57 = vector.load %arg5[%c0_21, %c0_22] : memref<16x49xf32, #tpu.memory_space<vmem>>, vector<16x49xf32>
    %cst_23 = arith.constant dense<0.000000e+00> : vector<16x256xf32>
    %58 = tpu.matmul %57, %56, %cst_23 {dimension_numbers = #tpu.dot_dimension_numbers<[1], [0], [0], [1], [0, 0, 1, 1], [], []>} : vector<16x49xf32>, vector<49x256xf32>, vector<16x256xf32> -> vector<16x256xf32>
    %cst_24 = arith.constant 0.000000e+00 : f32
    %59 = vector.broadcast %cst_24 : f32 to vector<16x256xf32>
    %60 = arith.maximumf %58, %59 : vector<16x256xf32>
    %61 = arith.addf %60, %45 : vector<16x256xf32>
    %cst_25 = arith.constant 0.000000e+00 : f32
    %62 = vector.broadcast %cst_25 : f32 to vector<16x256xf32>
    %63 = arith.maximumf %61, %62 : vector<16x256xf32>
    %c0_26 = arith.constant 0 : index
    %c0_27 = arith.constant 0 : index
    %64 = vector.load %arg6[%c0_26, %c0_27] : memref<16x256xf32, #tpu.memory_space<vmem>>, vector<16x256xf32>
    tpu.vector_store %arg6[%c0_26, %c0_27], %63 {strides = array<i32>} : memref<16x256xf32, #tpu.memory_space<vmem>>, vector<16x256xf32>,
    return
  }
  func.func @transform_0(%arg0: i32) -> (i32, i32) {
    %c0_i32 = arith.constant 0 : i32
    %c0_i32_0 = arith.constant 0 : i32
    return %c0_i32, %arg0 : i32, i32
  }
  func.func @transform_1(%arg0: i32) -> (i32, i32) {
    %c0_i32 = arith.constant 0 : i32
    %c0_i32_0 = arith.constant 0 : i32
    %c0_i32_1 = arith.constant 0 : i32
    return %c0_i32, %c0_i32_0 : i32, i32
  }
  func.func @transform_2(%arg0: i32) -> (i32, i32) {
    %c0_i32 = arith.constant 0 : i32
    %c0_i32_0 = arith.constant 0 : i32
    %c0_i32_1 = arith.constant 0 : i32
    return %c0_i32, %c0_i32_0 : i32, i32
  }
  func.func @transform_3(%arg0: i32) -> (i32, i32) {
    %c0_i32 = arith.constant 0 : i32
    %c0_i32_0 = arith.constant 0 : i32
    %c0_i32_1 = arith.constant 0 : i32
    return %c0_i32, %c0_i32_0 : i32, i32
  }
  func.func @transform_4(%arg0: i32) -> (i32, i32) {
    %c0_i32 = arith.constant 0 : i32
    %c0_i32_0 = arith.constant 0 : i32
    %c0_i32_1 = arith.constant 0 : i32
    return %c0_i32, %c0_i32_0 : i32, i32
  }
  func.func @transform_5(%arg0: i32) -> (i32, i32) {
    %c0_i32 = arith.constant 0 : i32
    %c0_i32_0 = arith.constant 0 : i32
    return %c0_i32, %arg0 : i32, i32
  }
}

</mosaic_0001>

<llo_original>
// kernel: tpu_custom_call.1
$region0: #{tpu_custom_call.1}
  #allocation0 [shape = 'u32[]', space=smem, size = 0x4, offset = 0x4, fixed_abs, tag = 'smem constant byte address 0x4 - core index']
  #allocation1 [shape = 'u32[72,128]{1,0:T(1,128)}', space=vmem, size = 0x9000, scoped, tag = 'internal scratch']
  %s0 = inlined_call_operand.vmem [shape: f32[8,256], index: 0, kind: input, shape index: {}]
  %s1 = inlined_call_operand.vmem [shape: f32[8,1], index: 1, kind: input, shape index: {}]
  %s2 = inlined_call_operand.vmem [shape: f32[8,1], index: 2, kind: input, shape index: {}]
  %s3 = inlined_call_operand.hbm [shape: f32[32,25], index: 3, kind: input, shape index: {}]
  %s4 = inlined_call_operand.hbm [shape: f32[16,49], index: 4, kind: input, shape index: {}]
  %s5 = inlined_call_operand.hbm [shape: f32[16,256], index: 5, kind: output, shape index: {}]
  %s6 = sld [smem:[#allocation0]]
  $region38: #{tpu_custom_call.1} parent=0
    _
  %s8 = ssub.s32 1, %s6
  %s9 = scalar_select 0, %s8, %s6
  $region1: #{tpu_custom_call.1} parent=0
    #allocation2 [shape = 'u8[16384]{0}', space=vmem, size = 0x4000, scoped, tag = 'input window, operand 3, single buffered']
    #allocation3 [shape = 's32[1]{0}', space=sflag, size = 0x4, scoped, tag = 'scoped memory for tpu_custom_call.1']
    #allocation4 [shape = 's32[1]{0}', space=sflag, size = 0x4, scoped, tag = 'scoped memory for tpu_custom_call.1']
    #allocation5 [shape = 'u8[8192]{0}', space=vmem, size = 0x2000, scoped, tag = 'input window, operand 4, single buffered']
    #allocation6 [shape = 's32[1]{0}', space=sflag, size = 0x4, scoped, tag = 'scoped memory for tpu_custom_call.1']
    #allocation7 [shape = 'u8[16384]{0}', space=vmem, size = 0x4000, scoped, tag = 'output window, operand 0, single buffered']
    %10 = vsyncpa [#allocation3], 0
    %11 = vsyncpa [#allocation6], 0
    %12 = vsyncpa [#allocation4], 0
    // Predicated region
    $region2: #{tpu_custom_call.1} parent=1 // pred_check
      _
    $region3: #{tpu_custom_call.1} parent=1 // pred_check_branch
      %14 = sbr.rel (0) target = $region5
    $region4: #{tpu_custom_call.1} parent=1 // pred_region
      _
    $region5: #{tpu_custom_call.1} parent=1 // pred_fallthru
      _
    // Predicated region
    $region6: #{tpu_custom_call.1} parent=1 // pred_check
      _
    $region7: #{tpu_custom_call.1} parent=1 // pred_check_branch
      %16 = sbr.rel (0) target = $region9
    $region8: #{tpu_custom_call.1} parent=1 // pred_region
      _
    $region9: #{tpu_custom_call.1} parent=1 // pred_fallthru
      _
    // Predicated region
    $region10: #{tpu_custom_call.1} parent=1 // pred_check
      _
    $region11: #{tpu_custom_call.1} parent=1 // pred_check_branch
      %18 = sbr.rel (0) target = $region13
    $region12: #{tpu_custom_call.1} parent=1 // pred_region
      _
    $region13: #{tpu_custom_call.1} parent=1 // pred_fallthru
      _
    // Predicated region
    $region14: #{tpu_custom_call.1} parent=1 // pred_check
      _
    $region15: #{tpu_custom_call.1} parent=1 // pred_check_branch
      %20 = sbr.rel (0) target = $region17
    $region16: #{tpu_custom_call.1} parent=1 // pred_region
      %22 = vsyncadd [#allocation3], 0
      %s23 = sshll.u32 %s3, 4
      %s24 = int_to_ptr.hbm [resolvable:$true] %s23
      %s25 = sshll.u32 [#allocation2], 4
      %s26 = int_to_ptr.vmem [resolvable:$true] %s25
      %31 = dma.hbm_to_vmem [thread:$0]  %s24, 512, %s26, [#allocation3], 128, 128, 8
    $region17: #{tpu_custom_call.1} parent=1 // pred_fallthru
      _
    // Predicated region
    $region18: #{tpu_custom_call.1} parent=1 // pred_check
      _
    $region19: #{tpu_custom_call.1} parent=1 // pred_check_branch
      %33 = sbr.rel (0) target = $region21
    $region20: #{tpu_custom_call.1} parent=1 // pred_region
      %35 = vsyncadd [#allocation6], 0
      %s36 = sshll.u32 %s4, 4
      %s37 = int_to_ptr.hbm [resolvable:$true] %s36
      %s38 = sshll.u32 [#allocation5], 4
      %s39 = int_to_ptr.vmem [resolvable:$true] %s38
      %44 = dma.hbm_to_vmem [thread:$0]  %s37, 256, %s39, [#allocation6], 128, 128, 8
    $region21: #{tpu_custom_call.1} parent=1 // pred_fallthru
      _
    // Predicated region
    $region22: #{tpu_custom_call.1} parent=1 // pred_check
      _
    $region23: #{tpu_custom_call.1} parent=1 // pred_check_branch
      %46 = sbr.rel (0) target = $region25
    $region24: #{tpu_custom_call.1} parent=1 // pred_region
      %48 = dma.done [#allocation3], 512
    $region25: #{tpu_custom_call.1} parent=1 // pred_fallthru
      _
    // Predicated region
    $region26: #{tpu_custom_call.1} parent=1 // pred_check
      _
    $region27: #{tpu_custom_call.1} parent=1 // pred_check_branch
      %50 = sbr.rel (0) target = $region29
    $region28: #{tpu_custom_call.1} parent=1 // pred_region
      %52 = dma.done [#allocation6], 256
    $region29: #{tpu_custom_call.1} parent=1 // pred_fallthru
      _
    %v53 = vld [vmem:[%s0] sm:$0xff]
    %v54 = vld [vmem:[%s0 + $0x8] sm:$0xff]
    %v55 = vld [vmem:[%s1] sm:$0xff]
    %57 = vset.pattern.permute.xlu0 0
    %58 = vperm.xlu0 %57, %v55
    %v59 = vpop.permute.xlu0 %58
    %v61 = vmul.f32 %v53, %v59
    %v62 = vmul.f32 %v54, %v59
    %v63 = vld [vmem:[%s2] sm:$0xff]
    %65 = vset.pattern.permute.xlu0 0
    %66 = vperm.xlu0 %65, %v63
    %v67 = vpop.permute.xlu0 %66
    %v69 = vadd.f32 %v61, %v67
    %v70 = vadd.f32 %v62, %v67
    %v71 = vlaneseq
    %v72 = vand.u32 %v71, 127
    %v73 = vadd.s32 %v72, 128
    %vm74 = vcmp.lt.s32.totalorder %v72, 0
    %v75 = vsub.s32 0, %v72
    %v76 = vsel %vm74, %v75, %v72
    %v77 = vshrl.u32 %v76, 7
    %v78 = vand.u32 %v76, 127
    %v79 = vsub.s32 0, %v78
    %v80 = vsel %vm74, %v79, %v78
    %vm81 = vcmp.lt.s32.totalorder %v73, 0
    %v82 = vsub.s32 0, %v73
    %v83 = vsel %vm81, %v82, %v73
    %v84 = vshrl.u32 %v83, 7
    %v85 = vand.u32 %v83, 127
    %v86 = vsub.s32 0, %v85
    %v87 = vsel %vm81, %v86, %v85
    %vm88 = vcmp.ne.s32.totalorder %v80, 0
    %vm89 = vcmp.ne.s32.totalorder %v87, 0
    %vm90 = vcmp.lt.s32.totalorder %v80, 0
    %vm91 = vcmp.lt.s32.totalorder %v87, 0
    %vm92 = vmand %vm90, %vm88
    %vm93 = vmand %vm91, %vm89
    %v94 = vadd.s32 %v80, 128
    %v95 = vadd.s32 %v87, 128
    %v96 = vsel %vm92, %v94, %v80
    %v97 = vsel %vm93, %v95, %v87
    %vm98 = vcmp.ge.s32.totalorder %v96, 1
    %vm99 = vcmp.ge.s32.totalorder %v97, 1
    %vm100 = vcmp.ge.s32.totalorder %v96, 2
    %vm101 = vcmp.ge.s32.totalorder %v97, 2
    %102 = vrot.lane.b32.xlu0 %v69, 2
    %v103 = vpop.permute.xlu0 %102
    %104 = vrot.lane.b32.xlu0 %v70, 2
    %v105 = vpop.permute.xlu0 %104
    %vm106 = vcmp.lt.s32.totalorder %v72, 2
    %v107 = vsel %vm106, %v103, %v105
    %v108 = vsel %vm106, %v105, %v103
    %v109 = vsel %vm100, 1, 0
    %v110 = vsel %vm101, 1, 0
    %vm111 = vcmp.eq.s32.totalorder %v109, 1
    %vm112 = vcmp.eq.s32.totalorder %v110, 1
    %v113 = vsel %vm111, %v108, 0.0
    %v114 = vsel %vm112, %v107, 0.0
    %115 = vrot.lane.b32.xlu0 %v69, 1
    %v116 = vpop.permute.xlu0 %115
    %117 = vrot.lane.b32.xlu0 %v70, 1
    %v118 = vpop.permute.xlu0 %117
    %vm119 = vcmp.lt.s32.totalorder %v72, 1
    %v120 = vsel %vm119, %v116, %v118
    %v121 = vsel %vm119, %v118, %v116
    %v122 = vsel %vm98, 1, 0
    %v123 = vsel %vm99, 1, 0
    %vm124 = vcmp.eq.s32.totalorder %v122, 1
    %vm125 = vcmp.eq.s32.totalorder %v123, 1
    %v126 = vsel %vm124, %v121, 0.0
    %v127 = vsel %vm125, %v120, 0.0
    %v128 = vld [vmem:[#allocation2] sm:$0xff]
    %v129 = vld [vmem:[#allocation2 + $0x8] sm:$0xff]
    %v130 = vld [vmem:[#allocation2 + $0x10] sm:$0xff]
    %v131 = vld [vmem:[#allocation2 + $0x18] sm:$0xff]
    %vm132 = vcmask 203776
    %v134 = vsel %vm132, %v128, 0
    %v137 = vsel %vm132, %v129, 0
    %v140 = vsel %vm132, %v130, 0
    %v143 = vsel %vm132, %v131, 0
    %vm145 = vcmask 1040384
    %v147 = vsel %vm145, 1.0, 0
    %149 = vmatpush.msra.mxu0 0.0
    %150 = vmatpush.msra.mxu0 0.0
    %151 = vmatpush.msra.mxu0 0.0
    %152 = vmatpush.msra.mxu0 0.0
    %153 = vmatpush.msra.mxu0 0.0
    %154 = vmatpush.msra.mxu0 0.0
    %155 = vmatpush.msra.mxu0 0.0
    %156 = vmatpush.msra.mxu0 0.0
    %157 = vmatpush.msra.mxu0 0.0
    %158 = vmatpush.msra.mxu0 0.0
    %159 = vmatpush.msra.mxu0 0.0
    %160 = vmatpush.msra.mxu0 0.0
    %161 = vmatpush.msra.mxu0 %v147
    %162 = vmatpush.msra.mxu0 %v69
    %163 = vmatpush.msra.mxu0 %v126
    %164 = vmatpush.msra.mxu0 %v113
    %165 = vmatmul.f32.gmra.mxu0 %v134
    %v166 = vpop.f32.mrf.mxu0
    %v167 = vadd.f32 0.0, %v166
    %168 = vmatmul.f32.gmra.mxu0 %v137
    %v169 = vpop.f32.mrf.mxu0
    %v170 = vadd.f32 0.0, %v169
    %171 = vmatmul.f32.gmra.mxu0 %v140
    %v172 = vpop.f32.mrf.mxu0
    %v173 = vadd.f32 0.0, %v172
    %174 = vmatmul.f32.gmra.mxu0 %v143
    %v175 = vpop.f32.mrf.mxu0
    %v176 = vadd.f32 0.0, %v175
    %177 = vdwg.mxu0
    %178 = vmatpush.msra.mxu0 0.0
    %179 = vmatpush.msra.mxu0 0.0
    %180 = vmatpush.msra.mxu0 0.0
    %181 = vmatpush.msra.mxu0 0.0
    %182 = vmatpush.msra.mxu0 0.0
    %183 = vmatpush.msra.mxu0 0.0
    %184 = vmatpush.msra.mxu0 0.0
    %185 = vmatpush.msra.mxu0 0.0
    %186 = vmatpush.msra.mxu0 0.0
    %187 = vmatpush.msra.mxu0 0.0
    %188 = vmatpush.msra.mxu0 0.0
    %189 = vmatpush.msra.mxu0 0.0
    %190 = vmatpush.msra.mxu0 %v147
    %191 = vmatpush.msra.mxu0 %v70
    %192 = vmatpush.msra.mxu0 %v127
    %193 = vmatpush.msra.mxu0 %v114
    %194 = vmatmul.f32.gmra.mxu0 %v134
    %v195 = vpop.f32.mrf.mxu0
    %v196 = vadd.f32 0.0, %v195
    %197 = vmatmul.f32.gmra.mxu0 %v137
    %v198 = vpop.f32.mrf.mxu0
    %v199 = vadd.f32 0.0, %v198
    %200 = vmatmul.f32.gmra.mxu0 %v140
    %v201 = vpop.f32.mrf.mxu0
    %v202 = vadd.f32 0.0, %v201
    %203 = vmatmul.f32.gmra.mxu0 %v143
    %v204 = vpop.f32.mrf.mxu0
    %v205 = vadd.f32 0.0, %v204
    %206 = vdwg.mxu0
    %v207 = vmax.f32 %v167, 0.0
    %v208 = vmax.f32 %v196, 0.0
    %v209 = vmax.f32 %v170, 0.0
    %v210 = vmax.f32 %v199, 0.0
    %211 = vrot.lane.b32.xlu0 %v207, 2
    %v212 = vpop.permute.xlu0 %211
    %213 = vrot.lane.b32.xlu0 %v209, 2
    %v214 = vpop.permute.xlu0 %213
    %215 = vrot.lane.b32.xlu0 %v208, 2
    %v216 = vpop.permute.xlu0 %215
    %217 = vrot.lane.b32.xlu0 %v210, 2
    %v218 = vpop.permute.xlu0 %217
    %v219 = vsel %vm106, %v212, %v216
    %v220 = vsel %vm106, %v214, %v218
    %v221 = vsel %vm106, %v216, %v212
    %v222 = vsel %vm106, %v218, %v214
    %v223 = vsel %vm111, %v221, 0.0
    %v224 = vsel %vm112, %v219, 0.0
    %v225 = vsel %vm111, %v222, 0.0
    %v226 = vsel %vm112, %v220, 0.0
    %227 = vrot.lane.b32.xlu0 %v207, 1
    %v228 = vpop.permute.xlu0 %227
    %229 = vrot.lane.b32.xlu0 %v209, 1
    %v230 = vpop.permute.xlu0 %229
    %231 = vrot.lane.b32.xlu0 %v208, 1
    %v232 = vpop.permute.xlu0 %231
    %233 = vrot.lane.b32.xlu0 %v210, 1
    %v234 = vpop.permute.xlu0 %233
    %v235 = vsel %vm119, %v228, %v232
    %v236 = vsel %vm119, %v230, %v234
    %v237 = vsel %vm119, %v232, %v228
    %v238 = vsel %vm119, %v234, %v230
    %v239 = vsel %vm124, %v237, 0.0
    %v240 = vsel %vm125, %v235, 0.0
    %v241 = vsel %vm124, %v238, 0.0
    %v242 = vsel %vm125, %v236, 0.0
    %v243 = vld [vmem:[#allocation5] sm:$0xff]
    %v244 = vld [vmem:[#allocation5 + $0x8] sm:$0xff]
    %vm245 = vcmask 400384
    %v247 = vsel %vm245, %v243, 0
    %v250 = vsel %vm245, %v244, 0
    %252 = vmatpush.msra.mxu0 0.0
    %253 = vmatpush.msra.mxu0 0.0
    %254 = vmatpush.msra.mxu0 0.0
    %255 = vmatpush.msra.mxu0 0.0
    %256 = vmatpush.msra.mxu0 0.0
    %257 = vmatpush.msra.mxu0 0.0
    %258 = vmatpush.msra.mxu0 0.0
    %259 = vmatpush.msra.mxu0 0.0
    %260 = vmatpush.msra.mxu0 0.0
    %261 = vmatpush.msra.mxu0 %v147
    %262 = vmatpush.msra.mxu0 %v209
    %263 = vmatpush.msra.mxu0 %v207
    %264 = vmatpush.msra.mxu0 %v241
    %265 = vmatpush.msra.mxu0 %v239
    %266 = vmatpush.msra.mxu0 %v225
    %267 = vmatpush.msra.mxu0 %v223
    %268 = vmatmul.f32.gmra.mxu0 %v247
    %v269 = vpop.f32.mrf.mxu0
    %v270 = vadd.f32 0.0, %v269
    %271 = vmatmul.f32.gmra.mxu0 %v250
    %v272 = vpop.f32.mrf.mxu0
    %v273 = vadd.f32 0.0, %v272
    %274 = vdwg.mxu0
    %275 = vmatpush.msra.mxu0 0.0
    %276 = vmatpush.msra.mxu0 0.0
    %277 = vmatpush.msra.mxu0 0.0
    %278 = vmatpush.msra.mxu0 0.0
    %279 = vmatpush.msra.mxu0 0.0
    %280 = vmatpush.msra.mxu0 0.0
    %281 = vmatpush.msra.mxu0 0.0
    %282 = vmatpush.msra.mxu0 0.0
    %283 = vmatpush.msra.mxu0 0.0
    %284 = vmatpush.msra.mxu0 %v147
    %285 = vmatpush.msra.mxu0 %v210
    %286 = vmatpush.msra.mxu0 %v208
    %287 = vmatpush.msra.mxu0 %v242
    %288 = vmatpush.msra.mxu0 %v240
    %289 = vmatpush.msra.mxu0 %v226
    %290 = vmatpush.msra.mxu0 %v224
    %291 = vmatmul.f32.gmra.mxu0 %v247
    %v292 = vpop.f32.mrf.mxu0
    %v293 = vadd.f32 0.0, %v292
    %294 = vmatmul.f32.gmra.mxu0 %v250
    %v295 = vpop.f32.mrf.mxu0
    %v296 = vadd.f32 0.0, %v295
    %297 = vdwg.mxu0
    %v298 = vmax.f32 %v270, 0.0
    %v299 = vmax.f32 %v293, 0.0
    %v300 = vmax.f32 %v273, 0.0
    %v301 = vmax.f32 %v296, 0.0
    %v302 = vadd.f32 %v298, %v173
    %v303 = vadd.f32 %v299, %v202
    %v304 = vadd.f32 %v300, %v176
    %v305 = vadd.f32 %v301, %v205
    %v306 = vmax.f32 %v302, 0.0
    %v307 = vmax.f32 %v303, 0.0
    %v308 = vmax.f32 %v304, 0.0
    %v309 = vmax.f32 %v305, 0.0
    %310 = vst [vmem:[#allocation7] sm:$0xff] %v306
    %311 = vst [vmem:[#allocation7 + $0x8] sm:$0xff] %v307
    %312 = vst [vmem:[#allocation7 + $0x10] sm:$0xff] %v308
    %313 = vst [vmem:[#allocation7 + $0x18] sm:$0xff] %v309
    // Predicated region
    $region30: #{tpu_custom_call.1} parent=1 // pred_check
      _
    $region31: #{tpu_custom_call.1} parent=1 // pred_check_branch
      %315 = sbr.rel (0) target = $region33
    $region32: #{tpu_custom_call.1} parent=1 // pred_region
      %317 = vsyncadd [#allocation4], 0
      %s318 = sshll.u32 [#allocation7], 4
      %s319 = int_to_ptr.vmem [resolvable:$true] %s318
      %s320 = sshll.u32 %s5, 4
      %s321 = int_to_ptr.hbm [resolvable:$true] %s320
      %326 = dma.vmem_to_hbm [thread:$0]  %s319, 512, %s321, [#allocation4], 256, 256, 16
    $region33: #{tpu_custom_call.1} parent=1 // pred_fallthru
      _
    // Predicated region
    $region34: #{tpu_custom_call.1} parent=1 // pred_check
      _
    $region35: #{tpu_custom_call.1} parent=1 // pred_check_branch
      %328 = sbr.rel (0) target = $region37
    $region36: #{tpu_custom_call.1} parent=1 // pred_region
      %330 = dma.done [#allocation4], 512
    $region37: #{tpu_custom_call.1} parent=1 // pred_fallthru
      _
    %331 = vsyncpa [#allocation3], 1
    %332 = vsyncpa [#allocation6], 1
    %333 = vsyncpa [#allocation4], 1

</llo_original>
